<compile_context>
chip_gen: v7x
topology: tpu7x:2x2x1
jax: 0.10.0
libtpu: 0.0.40
codegen_flags: <defaults>
</compile_context>

<pallas_src>
import jax
import jax.numpy as jnp
from jax.experimental import pallas as pl
from jax.experimental.pallas import tpu as pltpu


def sfnet_kernel(x_ref, w1_ref, b1_ref, w2_ref, b2_ref, w3_ref, b3_ref,
                 wf_ref, bf_ref, o_ref):
    # x_ref: (2, C_in, TB) — position-major, features on sublanes, batch on lanes.
    xv = x_ref[...]                                   # f32 tile
    residual = xv[:, 0, :]                            # (2, TB) channel-0, exact f32

    # Two positions processed as separate feature-major tiles: no in-kernel
    # transpose, last dim = batch tile (lane-dense, multiple of 128 when tiled).
    hs = [xv[0].astype(jnp.bfloat16), xv[1].astype(jnp.bfloat16)]   # (C_in, TB)

    for w_ref, b_ref in ((w1_ref, b1_ref), (w2_ref, b2_ref), (w3_ref, b3_ref)):
        w = w_ref[...]                                # (Cout, Cin) bf16 (PyTorch layout)
        b = b_ref[...]                                # (Cout, 1)  f32
        nxt = []
        for h in hs:
            # 1x1 Conv1d == channel matmul: (Cout, Cin) @ (Cin, TB) on the MXU.
            z = jnp.dot(w, h, preferred_element_type=jnp.float32) + b
            # sigmoid(z) = 0.5*tanh(0.5*z)+0.5 : single EUP op, result in [0,1].
            s = 0.5 * jnp.tanh(0.5 * z) + 0.5
            nxt.append(s.astype(jnp.bfloat16))
        hs = nxt

    # MaxPool1d(kernel=2) over L: plain VPU max between the two position tiles.
    pooled = jnp.maximum(hs[0], hs[1])                # (32, TB) bf16

    # fc: (2, 32) @ (32, TB) -> lane-dense (2, TB) output tile.
    out = jnp.dot(wf_ref[...], pooled,
                  preferred_element_type=jnp.float32) + bf_ref[...]
    o_ref[...] = residual + out                       # (2, TB) f32


def _pick_batch_tile(B, block_b, c_in):
    if B > block_b:
        assert B % block_b == 0, "pad batch to a multiple of block_b"
        tb = block_b
    elif B >= 256 and B % 256 == 0:
        tb = B // 2            # grid >= 2 so v7x's 2 TensorCores both get work
    else:
        tb = B                 # small batch: single full-dim block
    # Keep the double-buffered x block (<= 2 * 2*C_in*tb*4 bytes) well inside
    # the 32 MiB scoped VMEM budget even at large input_dim.
    while tb >= 256 and B % (tb // 2) == 0 and 2 * (2 * c_in * tb * 4) > 8 * 2**20:
        tb //= 2
    return tb


def sfnet_forward(x, params, *, block_b=2048):
    """x: (B, C_in, 2) float32 in native PyTorch NCL layout."""
    B, C_in, L = x.shape
    assert L == 2, "SFNet's fc(node_list[-1], 2) after MaxPool1d(2) requires L == 2"
    w1, b1, w2, b2, w3, b3, wf, bfc = params

    # bf16 MXU inputs (weights); biases stay f32.
    w1b, w2b, w3b, wfb = (w.astype(jnp.bfloat16) for w in (w1, w2, w3, wf))

    tb = _pick_batch_tile(B, block_b, C_in)
    grid = (B // tb,)

    # Single wrapper-side transpose to feature-major / batch-on-lanes layout.
    x_t = jnp.transpose(x, (2, 1, 0))                 # (2, C_in, B)

    x_spec = pl.BlockSpec((2, C_in, tb), lambda i: (0, 0, i))
    const2 = lambda i: (0, 0)                          # weights stay VMEM-resident
    w_specs = [pl.BlockSpec(a.shape, const2)
               for a in (w1b, b1, w2b, b2, w3b, b3, wfb, bfc)]
    out_spec = pl.BlockSpec((2, tb), lambda i: (0, i))  # lane-dense output block

    out_t = pl.pallas_call(
        sfnet_kernel,
        out_shape=jax.ShapeDtypeStruct((2, B), jnp.float32),
        grid=grid,
        in_specs=[x_spec] + w_specs,
        out_specs=out_spec,
        compiler_params=pltpu.CompilerParams(
            dimension_semantics=("parallel",),        # megacore sharding on v7x
            vmem_limit_bytes=32 * 1024 * 1024),       # above v5e's 16 MiB default
    )(x_t, w1b, b1, w2b, b2, w3b, b3, wfb, bfc)

    return out_t.T                                     # back to (B, 2); only 8*B bytes


def sfnet_reference(x, params):
    # pure-JAX f32 reference for correctness checking
    w1, b1, w2, b2, w3, b3, wf, bfc = params
    h = jnp.transpose(x, (0, 2, 1))                    # (B, L, C_in)
    for w, b in ((w1, b1), (w2, b2), (w3, b3)):
        h = jax.nn.sigmoid(jnp.einsum('blc,oc->blo', h, w) + b[:, 0])
    pooled = jnp.max(h, axis=1)                        # (B, 32)
    out = pooled @ wf.T + bfc[:, 0]
    return x[:, 0, :] + out


def make_params(key, input_dim, node_list=(128, 64, 32)):
    # deterministic xavier-uniform weights in native PyTorch (Cout, Cin) layout
    def xavier(k, fan_out, fan_in):
        limit = (6.0 / (fan_in + fan_out)) ** 0.5
        return jax.random.uniform(k, (fan_out, fan_in), jnp.float32, -limit, limit)

    keys = jax.random.split(key, 8)
    dims = [input_dim] + list(node_list)
    params = []
    for i in range(3):
        w = xavier(keys[2 * i], dims[i + 1], dims[i])              # (Cout, Cin)
        b = jax.random.uniform(keys[2 * i + 1], (dims[i + 1], 1),
                               jnp.float32, -0.1, 0.1)             # (Cout, 1)
        params += [w, b]
    wf = xavier(keys[6], 2, node_list[-1])                         # (2, 32)
    bfc = jax.random.uniform(keys[7], (2, 1), jnp.float32, -0.1, 0.1)
    params += [wf, bfc]
    return tuple(params)


if __name__ == "__main__":
    key = jax.random.PRNGKey(0)
    k_x, k_p = jax.random.split(key)

    B, C_in, L = 8, 16, 2                 # small shapes; L must be 2 (see assert)
    x = jax.random.normal(k_x, (B, C_in, L), jnp.float32)
    params = make_params(k_p, C_in)

    out = jax.block_until_ready(sfnet_forward(x, params))
    ref = sfnet_reference(x, params)

    assert out.shape == (B, 2)
    # Kernel uses bf16 MXU inputs; reference is pure f32, hence loose tolerance.
    assert jnp.allclose(out, ref, atol=5e-2, rtol=5e-2), "mismatch vs JAX reference"

    print("KERNEL_OK")
</pallas_src>

<mosaic_0001>
module attributes {stable_mosaic.version = 11 : i64} {
  func.func @sfnet_kernel(%arg0: i32, %arg1: memref<2x16x8xf32, #tpu.memory_space<vmem>>, %arg2: memref<128x16xbf16, #tpu.memory_space<vmem>>, %arg3: memref<128x1xf32, #tpu.memory_space<vmem>>, %arg4: memref<64x128xbf16, #tpu.memory_space<vmem>>, %arg5: memref<64x1xf32, #tpu.memory_space<vmem>>, %arg6: memref<32x64xbf16, #tpu.memory_space<vmem>>, %arg7: memref<32x1xf32, #tpu.memory_space<vmem>>, %arg8: memref<2x32xbf16, #tpu.memory_space<vmem>>, %arg9: memref<2x1xf32, #tpu.memory_space<vmem>>, %arg10: memref<2x8xf32, #tpu.memory_space<vmem>>) attributes {dimension_semantics = [#tpu.dimension_semantics<parallel>], iteration_bounds = array<i64: 1>, scalar_prefetch = 0 : i64, scratch_operands = 0 : i64, tpu.core_type = #tpu.core_type<tc>, window_params = [{transform_indices = @transform_0, window_bounds = array<i64: 2, 16, 8>}, {pipeline_mode = #tpu.pipeline_mode<synchronous>, transform_indices = @transform_1, window_bounds = array<i64: 128, 16>}, {pipeline_mode = #tpu.pipeline_mode<synchronous>, transform_indices = @transform_2, window_bounds = array<i64: 128, 1>}, {pipeline_mode = #tpu.pipeline_mode<synchronous>, transform_indices = @transform_3, window_bounds = array<i64: 64, 128>}, {pipeline_mode = #tpu.pipeline_mode<synchronous>, transform_indices = @transform_4, window_bounds = array<i64: 64, 1>}, {pipeline_mode = #tpu.pipeline_mode<synchronous>, transform_indices = @transform_5, window_bounds = array<i64: 32, 64>}, {pipeline_mode = #tpu.pipeline_mode<synchronous>, transform_indices = @transform_6, window_bounds = array<i64: 32, 1>}, {pipeline_mode = #tpu.pipeline_mode<synchronous>, transform_indices = @transform_7, window_bounds = array<i64: 2, 32>}, {pipeline_mode = #tpu.pipeline_mode<synchronous>, transform_indices = @transform_8, window_bounds = array<i64: 2, 1>}, {transform_indices = @transform_9, window_bounds = array<i64: 2, 8>}]} {
    %c0 = arith.constant 0 : index
    %c0_0 = arith.constant 0 : index
    %c0_1 = arith.constant 0 : index
    %0 = vector.load %arg1[%c0, %c0_0, %c0_1] : memref<2x16x8xf32, #tpu.memory_space<vmem>>, vector<2x16x8xf32>
    %1 = vector.extract_strided_slice %0 {offsets = [0, 0, 0], sizes = [2, 1, 8], strides = [1, 1, 1]} : vector<2x16x8xf32> to vector<2x1x8xf32>
    %2 = vector.shape_cast %1 : vector<2x1x8xf32> to vector<2x8xf32>
    %3 = vector.extract_strided_slice %0 {offsets = [0, 0, 0], sizes = [1, 16, 8], strides = [1, 1, 1]} : vector<2x16x8xf32> to vector<1x16x8xf32>
    %4 = vector.shape_cast %3 : vector<1x16x8xf32> to vector<16x8xf32>
    %5 = arith.truncf %4 : vector<16x8xf32> to vector<16x8xbf16>
    %6 = vector.extract_strided_slice %0 {offsets = [1, 0, 0], sizes = [1, 16, 8], strides = [1, 1, 1]} : vector<2x16x8xf32> to vector<1x16x8xf32>
    %7 = vector.shape_cast %6 : vector<1x16x8xf32> to vector<16x8xf32>
    %8 = arith.truncf %7 : vector<16x8xf32> to vector<16x8xbf16>
    %c0_2 = arith.constant 0 : index
    %c0_3 = arith.constant 0 : index
    %9 = vector.load %arg2[%c0_2, %c0_3] : memref<128x16xbf16, #tpu.memory_space<vmem>>, vector<128x16xbf16>
    %c0_4 = arith.constant 0 : index
    %c0_5 = arith.constant 0 : index
    %10 = vector.load %arg3[%c0_4, %c0_5] : memref<128x1xf32, #tpu.memory_space<vmem>>, vector<128x1xf32>
    %cst = arith.constant dense<0.000000e+00> : vector<128x8xf32>
    %11 = tpu.matmul %9, %5, %cst {dimension_numbers = #tpu.dot_dimension_numbers<[1], [0], [0], [1], [0, 0, 1, 1], [], []>} : vector<128x16xbf16>, vector<16x8xbf16>, vector<128x8xf32> -> vector<128x8xf32>
    %12 = vector.broadcast %10 : vector<128x1xf32> to vector<128x8xf32>
    %13 = arith.addf %11, %12 : vector<128x8xf32>
    %cst_6 = arith.constant 5.000000e-01 : f32
    %14 = vector.broadcast %cst_6 : f32 to vector<128x8xf32>
    %15 = arith.mulf %14, %13 : vector<128x8xf32>
    %16 = math.tanh %15 : vector<128x8xf32>
    %cst_7 = arith.constant 5.000000e-01 : f32
    %17 = vector.broadcast %cst_7 : f32 to vector<128x8xf32>
    %18 = arith.mulf %17, %16 : vector<128x8xf32>
    %cst_8 = arith.constant 5.000000e-01 : f32
    %19 = vector.broadcast %cst_8 : f32 to vector<128x8xf32>
    %20 = arith.addf %18, %19 : vector<128x8xf32>
    %21 = arith.truncf %20 : vector<128x8xf32> to vector<128x8xbf16>
    %cst_9 = arith.constant dense<0.000000e+00> : vector<128x8xf32>
    %22 = tpu.matmul %9, %8, %cst_9 {dimension_numbers = #tpu.dot_dimension_numbers<[1], [0], [0], [1], [0, 0, 1, 1], [], []>} : vector<128x16xbf16>, vector<16x8xbf16>, vector<128x8xf32> -> vector<128x8xf32>
    %23 = vector.broadcast %10 : vector<128x1xf32> to vector<128x8xf32>
    %24 = arith.addf %22, %23 : vector<128x8xf32>
    %cst_10 = arith.constant 5.000000e-01 : f32
    %25 = vector.broadcast %cst_10 : f32 to vector<128x8xf32>
    %26 = arith.mulf %25, %24 : vector<128x8xf32>
    %27 = math.tanh %26 : vector<128x8xf32>
    %cst_11 = arith.constant 5.000000e-01 : f32
    %28 = vector.broadcast %cst_11 : f32 to vector<128x8xf32>
    %29 = arith.mulf %28, %27 : vector<128x8xf32>
    %cst_12 = arith.constant 5.000000e-01 : f32
    %30 = vector.broadcast %cst_12 : f32 to vector<128x8xf32>
    %31 = arith.addf %29, %30 : vector<128x8xf32>
    %32 = arith.truncf %31 : vector<128x8xf32> to vector<128x8xbf16>
    %c0_13 = arith.constant 0 : index
    %c0_14 = arith.constant 0 : index
    %33 = vector.load %arg4[%c0_13, %c0_14] : memref<64x128xbf16, #tpu.memory_space<vmem>>, vector<64x128xbf16>
    %c0_15 = arith.constant 0 : index
    %c0_16 = arith.constant 0 : index
    %34 = vector.load %arg5[%c0_15, %c0_16] : memref<64x1xf32, #tpu.memory_space<vmem>>, vector<64x1xf32>
    %cst_17 = arith.constant dense<0.000000e+00> : vector<64x8xf32>
    %35 = tpu.matmul %33, %21, %cst_17 {dimension_numbers = #tpu.dot_dimension_numbers<[1], [0], [0], [1], [0, 0, 1, 1], [], []>} : vector<64x128xbf16>, vector<128x8xbf16>, vector<64x8xf32> -> vector<64x8xf32>
    %36 = vector.broadcast %34 : vector<64x1xf32> to vector<64x8xf32>
    %37 = arith.addf %35, %36 : vector<64x8xf32>
    %cst_18 = arith.constant 5.000000e-01 : f32
    %38 = vector.broadcast %cst_18 : f32 to vector<64x8xf32>
    %39 = arith.mulf %38, %37 : vector<64x8xf32>
    %40 = math.tanh %39 : vector<64x8xf32>
    %cst_19 = arith.constant 5.000000e-01 : f32
    %41 = vector.broadcast %cst_19 : f32 to vector<64x8xf32>
    %42 = arith.mulf %41, %40 : vector<64x8xf32>
    %cst_20 = arith.constant 5.000000e-01 : f32
    %43 = vector.broadcast %cst_20 : f32 to vector<64x8xf32>
    %44 = arith.addf %42, %43 : vector<64x8xf32>
    %45 = arith.truncf %44 : vector<64x8xf32> to vector<64x8xbf16>
    %cst_21 = arith.constant dense<0.000000e+00> : vector<64x8xf32>
    %46 = tpu.matmul %33, %32, %cst_21 {dimension_numbers = #tpu.dot_dimension_numbers<[1], [0], [0], [1], [0, 0, 1, 1], [], []>} : vector<64x128xbf16>, vector<128x8xbf16>, vector<64x8xf32> -> vector<64x8xf32>
    %47 = vector.broadcast %34 : vector<64x1xf32> to vector<64x8xf32>
    %48 = arith.addf %46, %47 : vector<64x8xf32>
    %cst_22 = arith.constant 5.000000e-01 : f32
    %49 = vector.broadcast %cst_22 : f32 to vector<64x8xf32>
    %50 = arith.mulf %49, %48 : vector<64x8xf32>
    %51 = math.tanh %50 : vector<64x8xf32>
    %cst_23 = arith.constant 5.000000e-01 : f32
    %52 = vector.broadcast %cst_23 : f32 to vector<64x8xf32>
    %53 = arith.mulf %52, %51 : vector<64x8xf32>
    %cst_24 = arith.constant 5.000000e-01 : f32
    %54 = vector.broadcast %cst_24 : f32 to vector<64x8xf32>
    %55 = arith.addf %53, %54 : vector<64x8xf32>
    %56 = arith.truncf %55 : vector<64x8xf32> to vector<64x8xbf16>
    %c0_25 = arith.constant 0 : index
    %c0_26 = arith.constant 0 : index
    %57 = vector.load %arg6[%c0_25, %c0_26] : memref<32x64xbf16, #tpu.memory_space<vmem>>, vector<32x64xbf16>
    %c0_27 = arith.constant 0 : index
    %c0_28 = arith.constant 0 : index
    %58 = vector.load %arg7[%c0_27, %c0_28] : memref<32x1xf32, #tpu.memory_space<vmem>>, vector<32x1xf32>
    %cst_29 = arith.constant dense<0.000000e+00> : vector<32x8xf32>
    %59 = tpu.matmul %57, %45, %cst_29 {dimension_numbers = #tpu.dot_dimension_numbers<[1], [0], [0], [1], [0, 0, 1, 1], [], []>} : vector<32x64xbf16>, vector<64x8xbf16>, vector<32x8xf32> -> vector<32x8xf32>
    %60 = vector.broadcast %58 : vector<32x1xf32> to vector<32x8xf32>
    %61 = arith.addf %59, %60 : vector<32x8xf32>
    %cst_30 = arith.constant 5.000000e-01 : f32
    %62 = vector.broadcast %cst_30 : f32 to vector<32x8xf32>
    %63 = arith.mulf %62, %61 : vector<32x8xf32>
    %64 = math.tanh %63 : vector<32x8xf32>
    %cst_31 = arith.constant 5.000000e-01 : f32
    %65 = vector.broadcast %cst_31 : f32 to vector<32x8xf32>
    %66 = arith.mulf %65, %64 : vector<32x8xf32>
    %cst_32 = arith.constant 5.000000e-01 : f32
    %67 = vector.broadcast %cst_32 : f32 to vector<32x8xf32>
    %68 = arith.addf %66, %67 : vector<32x8xf32>
    %69 = arith.truncf %68 : vector<32x8xf32> to vector<32x8xbf16>
    %cst_33 = arith.constant dense<0.000000e+00> : vector<32x8xf32>
    %70 = tpu.matmul %57, %56, %cst_33 {dimension_numbers = #tpu.dot_dimension_numbers<[1], [0], [0], [1], [0, 0, 1, 1], [], []>} : vector<32x64xbf16>, vector<64x8xbf16>, vector<32x8xf32> -> vector<32x8xf32>
    %71 = vector.broadcast %58 : vector<32x1xf32> to vector<32x8xf32>
    %72 = arith.addf %70, %71 : vector<32x8xf32>
    %cst_34 = arith.constant 5.000000e-01 : f32
    %73 = vector.broadcast %cst_34 : f32 to vector<32x8xf32>
    %74 = arith.mulf %73, %72 : vector<32x8xf32>
    %75 = math.tanh %74 : vector<32x8xf32>
    %cst_35 = arith.constant 5.000000e-01 : f32
    %76 = vector.broadcast %cst_35 : f32 to vector<32x8xf32>
    %77 = arith.mulf %76, %75 : vector<32x8xf32>
    %cst_36 = arith.constant 5.000000e-01 : f32
    %78 = vector.broadcast %cst_36 : f32 to vector<32x8xf32>
    %79 = arith.addf %77, %78 : vector<32x8xf32>
    %80 = arith.truncf %79 : vector<32x8xf32> to vector<32x8xbf16>
    %81 = arith.maximumf %69, %80 : vector<32x8xbf16>
    %c0_37 = arith.constant 0 : index
    %c0_38 = arith.constant 0 : index
    %82 = vector.load %arg8[%c0_37, %c0_38] : memref<2x32xbf16, #tpu.memory_space<vmem>>, vector<2x32xbf16>
    %cst_39 = arith.constant dense<0.000000e+00> : vector<2x8xf32>
    %83 = tpu.matmul %82, %81, %cst_39 {dimension_numbers = #tpu.dot_dimension_numbers<[1], [0], [0], [1], [0, 0, 1, 1], [], []>} : vector<2x32xbf16>, vector<32x8xbf16>, vector<2x8xf32> -> vector<2x8xf32>
    %c0_40 = arith.constant 0 : index
    %c0_41 = arith.constant 0 : index
    %84 = vector.load %arg9[%c0_40, %c0_41] : memref<2x1xf32, #tpu.memory_space<vmem>>, vector<2x1xf32>
    %85 = vector.broadcast %84 : vector<2x1xf32> to vector<2x8xf32>
    %86 = arith.addf %83, %85 : vector<2x8xf32>
    %87 = arith.addf %2, %86 : vector<2x8xf32>
    %c0_42 = arith.constant 0 : index
    %c0_43 = arith.constant 0 : index
    %88 = vector.load %arg10[%c0_42, %c0_43] : memref<2x8xf32, #tpu.memory_space<vmem>>, vector<2x8xf32>
    tpu.vector_store %arg10[%c0_42, %c0_43], %87 {strides = array<i32>} : memref<2x8xf32, #tpu.memory_space<vmem>>, vector<2x8xf32>,
    return
  }
  func.func @transform_0(%arg0: i32) -> (i32, i32, i32) {
    %c0_i32 = arith.constant 0 : i32
    %c0_i32_0 = arith.constant 0 : i32
    %c0_i32_1 = arith.constant 0 : i32
    return %c0_i32, %c0_i32_0, %arg0 : i32, i32, i32
  }
  func.func @transform_1(%arg0: i32) -> (i32, i32) {
    %c0_i32 = arith.constant 0 : i32
    %c0_i32_0 = arith.constant 0 : i32
    %c0_i32_1 = arith.constant 0 : i32
    return %c0_i32, %c0_i32_0 : i32, i32
  }
  func.func @transform_2(%arg0: i32) -> (i32, i32) {
    %c0_i32 = arith.constant 0 : i32
    %c0_i32_0 = arith.constant 0 : i32
    %c0_i32_1 = arith.constant 0 : i32
    return %c0_i32, %c0_i32_0 : i32, i32
  }
  func.func @transform_3(%arg0: i32) -> (i32, i32) {
    %c0_i32 = arith.constant 0 : i32
    %c0_i32_0 = arith.constant 0 : i32
    %c0_i32_1 = arith.constant 0 : i32
    return %c0_i32, %c0_i32_0 : i32, i32
  }
  func.func @transform_4(%arg0: i32) -> (i32, i32) {
    %c0_i32 = arith.constant 0 : i32
    %c0_i32_0 = arith.constant 0 : i32
    %c0_i32_1 = arith.constant 0 : i32
    return %c0_i32, %c0_i32_0 : i32, i32
  }
  func.func @transform_5(%arg0: i32) -> (i32, i32) {
    %c0_i32 = arith.constant 0 : i32
    %c0_i32_0 = arith.constant 0 : i32
    %c0_i32_1 = arith.constant 0 : i32
    return %c0_i32, %c0_i32_0 : i32, i32
  }
  func.func @transform_6(%arg0: i32) -> (i32, i32) {
    %c0_i32 = arith.constant 0 : i32
    %c0_i32_0 = arith.constant 0 : i32
    %c0_i32_1 = arith.constant 0 : i32
    return %c0_i32, %c0_i32_0 : i32, i32
  }
  func.func @transform_7(%arg0: i32) -> (i32, i32) {
    %c0_i32 = arith.constant 0 : i32
    %c0_i32_0 = arith.constant 0 : i32
    %c0_i32_1 = arith.constant 0 : i32
    return %c0_i32, %c0_i32_0 : i32, i32
  }
  func.func @transform_8(%arg0: i32) -> (i32, i32) {
    %c0_i32 = arith.constant 0 : i32
    %c0_i32_0 = arith.constant 0 : i32
    %c0_i32_1 = arith.constant 0 : i32
    return %c0_i32, %c0_i32_0 : i32, i32
  }
  func.func @transform_9(%arg0: i32) -> (i32, i32) {
    %c0_i32 = arith.constant 0 : i32
    %c0_i32_0 = arith.constant 0 : i32
    return %c0_i32, %arg0 : i32, i32
  }
}

</mosaic_0001>

<llo_original>
// kernel: tpu_custom_call.1
$region0: #{tpu_custom_call.1}
  #allocation0 [shape = 'u32[]', space=smem, size = 0x4, offset = 0x4, fixed_abs, tag = 'smem constant byte address 0x4 - core index']
  #allocation1 [shape = 'u32[144,128]{1,0:T(1,128)}', space=vmem, size = 0x12000, scoped, tag = 'internal scratch']
  %s0 = inlined_call_operand.vmem [shape: f32[2,16,8], index: 0, kind: input, shape index: {}]
  %s1 = inlined_call_operand.vmem [shape: bf16[128,16], index: 1, kind: input, shape index: {}]
  %s2 = inlined_call_operand.vmem [shape: f32[128,1], index: 2, kind: input, shape index: {}]
  %s3 = inlined_call_operand.vmem [shape: bf16[64,128], index: 3, kind: input, shape index: {}]
  %s4 = inlined_call_operand.vmem [shape: f32[64,1], index: 4, kind: input, shape index: {}]
  %s5 = inlined_call_operand.vmem [shape: bf16[32,64], index: 5, kind: input, shape index: {}]
  %s6 = inlined_call_operand.vmem [shape: f32[32,1], index: 6, kind: input, shape index: {}]
  %s7 = inlined_call_operand.vmem [shape: bf16[2,32], index: 7, kind: input, shape index: {}]
  %s8 = inlined_call_operand.vmem [shape: f32[2,1], index: 8, kind: input, shape index: {}]
  %s9 = inlined_call_operand.hbm [shape: f32[2,8], index: 9, kind: output, shape index: {}]
  %s10 = sld [smem:[#allocation0]]
  $region46: #{tpu_custom_call.1} parent=0
    _
  %s12 = ssub.s32 1, %s10
  %s13 = scalar_select 0, %s12, %s10
  $region1: #{tpu_custom_call.1} parent=0
    #allocation2 [shape = 'u8[1024]{0}', space=vmem, size = 0x400, scoped, tag = 'output window, operand 0, single buffered']
    #allocation3 [shape = 's32[1]{0}', space=sflag, size = 0x4, scoped, tag = 'scoped memory for tpu_custom_call.1']
    %14 = vsyncpa [#allocation3], 0
    // Predicated region
    $region2: #{tpu_custom_call.1} parent=1 // pred_check
      _
    $region3: #{tpu_custom_call.1} parent=1 // pred_check_branch
      %16 = sbr.rel (0) target = $region5
    $region4: #{tpu_custom_call.1} parent=1 // pred_region
      _
    $region5: #{tpu_custom_call.1} parent=1 // pred_fallthru
      _
    // Predicated region
    $region6: #{tpu_custom_call.1} parent=1 // pred_check
      _
    $region7: #{tpu_custom_call.1} parent=1 // pred_check_branch
      %18 = sbr.rel (0) target = $region9
    $region8: #{tpu_custom_call.1} parent=1 // pred_region
      _
    $region9: #{tpu_custom_call.1} parent=1 // pred_fallthru
      _
    // Predicated region
    $region10: #{tpu_custom_call.1} parent=1 // pred_check
      _
    $region11: #{tpu_custom_call.1} parent=1 // pred_check_branch
      %20 = sbr.rel (0) target = $region13
    $region12: #{tpu_custom_call.1} parent=1 // pred_region
      _
    $region13: #{tpu_custom_call.1} parent=1 // pred_fallthru
      _
    // Predicated region
    $region14: #{tpu_custom_call.1} parent=1 // pred_check
      _
    $region15: #{tpu_custom_call.1} parent=1 // pred_check_branch
      %22 = sbr.rel (0) target = $region17
    $region16: #{tpu_custom_call.1} parent=1 // pred_region
      _
    $region17: #{tpu_custom_call.1} parent=1 // pred_fallthru
      _
    // Predicated region
    $region18: #{tpu_custom_call.1} parent=1 // pred_check
      _
    $region19: #{tpu_custom_call.1} parent=1 // pred_check_branch
      %24 = sbr.rel (0) target = $region21
    $region20: #{tpu_custom_call.1} parent=1 // pred_region
      _
    $region21: #{tpu_custom_call.1} parent=1 // pred_fallthru
      _
    // Predicated region
    $region22: #{tpu_custom_call.1} parent=1 // pred_check
      _
    $region23: #{tpu_custom_call.1} parent=1 // pred_check_branch
      %26 = sbr.rel (0) target = $region25
    $region24: #{tpu_custom_call.1} parent=1 // pred_region
      _
    $region25: #{tpu_custom_call.1} parent=1 // pred_fallthru
      _
    // Predicated region
    $region26: #{tpu_custom_call.1} parent=1 // pred_check
      _
    $region27: #{tpu_custom_call.1} parent=1 // pred_check_branch
      %28 = sbr.rel (0) target = $region29
    $region28: #{tpu_custom_call.1} parent=1 // pred_region
      _
    $region29: #{tpu_custom_call.1} parent=1 // pred_fallthru
      _
    // Predicated region
    $region30: #{tpu_custom_call.1} parent=1 // pred_check
      _
    $region31: #{tpu_custom_call.1} parent=1 // pred_check_branch
      %30 = sbr.rel (0) target = $region33
    $region32: #{tpu_custom_call.1} parent=1 // pred_region
      _
    $region33: #{tpu_custom_call.1} parent=1 // pred_fallthru
      _
    // Predicated region
    $region34: #{tpu_custom_call.1} parent=1 // pred_check
      _
    $region35: #{tpu_custom_call.1} parent=1 // pred_check_branch
      %32 = sbr.rel (0) target = $region37
    $region36: #{tpu_custom_call.1} parent=1 // pred_region
      _
    $region37: #{tpu_custom_call.1} parent=1 // pred_fallthru
      _
    %v34 = vld [vmem:[%s0] sm:$0xff]
    %v35 = vld [vmem:[%s0 + $0x8] sm:$0xff]
    %v36 = vld [vmem:[%s0 + $0x10] sm:$0xff]
    %v37 = vld [vmem:[%s0 + $0x18] sm:$0xff]
    %v38 = vpack.c.bf16 %v35, %v34
    %v39 = vpack.c.bf16 %v37, %v36
    %v40 = vld [vmem:[%s1] sm:$0xf]
    %v41 = vld [vmem:[%s1 + $0x4] sm:$0xf]
    %v42 = vld [vmem:[%s1 + $0x8] sm:$0xf]
    %v43 = vld [vmem:[%s1 + $0xc] sm:$0xf]
    %v44 = vld [vmem:[%s1 + $0x10] sm:$0xf]
    %v45 = vld [vmem:[%s1 + $0x14] sm:$0xf]
    %v46 = vld [vmem:[%s1 + $0x18] sm:$0xf]
    %v47 = vld [vmem:[%s1 + $0x1c] sm:$0xf]
    %v48 = vld [vmem:[%s1 + $0x20] sm:$0xf]
    %v49 = vld [vmem:[%s1 + $0x24] sm:$0xf]
    %v50 = vld [vmem:[%s1 + $0x28] sm:$0xf]
    %v51 = vld [vmem:[%s1 + $0x2c] sm:$0xf]
    %v52 = vld [vmem:[%s1 + $0x30] sm:$0xf]
    %v53 = vld [vmem:[%s1 + $0x34] sm:$0xf]
    %v54 = vld [vmem:[%s1 + $0x38] sm:$0xf]
    %v55 = vld [vmem:[%s1 + $0x3c] sm:$0xf]
    %v56 = vld [vmem:[%s2] sm:$0xff]
    %v57 = vld [vmem:[%s2 + $0x8] sm:$0xff]
    %v58 = vld [vmem:[%s2 + $0x10] sm:$0xff]
    %v59 = vld [vmem:[%s2 + $0x18] sm:$0xff]
    %v60 = vld [vmem:[%s2 + $0x20] sm:$0xff]
    %v61 = vld [vmem:[%s2 + $0x28] sm:$0xff]
    %v62 = vld [vmem:[%s2 + $0x30] sm:$0xff]
    %v63 = vld [vmem:[%s2 + $0x38] sm:$0xff]
    %v64 = vld [vmem:[%s2 + $0x40] sm:$0xff]
    %v65 = vld [vmem:[%s2 + $0x48] sm:$0xff]
    %v66 = vld [vmem:[%s2 + $0x50] sm:$0xff]
    %v67 = vld [vmem:[%s2 + $0x58] sm:$0xff]
    %v68 = vld [vmem:[%s2 + $0x60] sm:$0xff]
    %v69 = vld [vmem:[%s2 + $0x68] sm:$0xff]
    %v70 = vld [vmem:[%s2 + $0x70] sm:$0xff]
    %v71 = vld [vmem:[%s2 + $0x78] sm:$0xff]
    %73 = vset.pattern.permute.xlu0 0
    %74 = vperm.xlu0 %73, %v56
    %v75 = vpop.permute.xlu0 %74
    %78 = vset.pattern.permute.xlu0 0
    %79 = vperm.xlu0 %78, %v57
    %v80 = vpop.permute.xlu0 %79
    %83 = vset.pattern.permute.xlu0 0
    %84 = vperm.xlu0 %83, %v58
    %v85 = vpop.permute.xlu0 %84
    %88 = vset.pattern.permute.xlu0 0
    %89 = vperm.xlu0 %88, %v59
    %v90 = vpop.permute.xlu0 %89
    %93 = vset.pattern.permute.xlu0 0
    %94 = vperm.xlu0 %93, %v60
    %v95 = vpop.permute.xlu0 %94
    %98 = vset.pattern.permute.xlu0 0
    %99 = vperm.xlu0 %98, %v61
    %v100 = vpop.permute.xlu0 %99
    %103 = vset.pattern.permute.xlu0 0
    %104 = vperm.xlu0 %103, %v62
    %v105 = vpop.permute.xlu0 %104
    %108 = vset.pattern.permute.xlu0 0
    %109 = vperm.xlu0 %108, %v63
    %v110 = vpop.permute.xlu0 %109
    %113 = vset.pattern.permute.xlu0 0
    %114 = vperm.xlu0 %113, %v64
    %v115 = vpop.permute.xlu0 %114
    %118 = vset.pattern.permute.xlu0 0
    %119 = vperm.xlu0 %118, %v65
    %v120 = vpop.permute.xlu0 %119
    %123 = vset.pattern.permute.xlu0 0
    %124 = vperm.xlu0 %123, %v66
    %v125 = vpop.permute.xlu0 %124
    %128 = vset.pattern.permute.xlu0 0
    %129 = vperm.xlu0 %128, %v67
    %v130 = vpop.permute.xlu0 %129
    %133 = vset.pattern.permute.xlu0 0
    %134 = vperm.xlu0 %133, %v68
    %v135 = vpop.permute.xlu0 %134
    %138 = vset.pattern.permute.xlu0 0
    %139 = vperm.xlu0 %138, %v69
    %v140 = vpop.permute.xlu0 %139
    %143 = vset.pattern.permute.xlu0 0
    %144 = vperm.xlu0 %143, %v70
    %v145 = vpop.permute.xlu0 %144
    %148 = vset.pattern.permute.xlu0 0
    %149 = vperm.xlu0 %148, %v71
    %v150 = vpop.permute.xlu0 %149
    %v168 = vunpack.c.l.b16 %v40
    %v169 = vunpack.c.l.b16 %v41
    %v170 = vunpack.c.l.b16 %v42
    %v171 = vunpack.c.l.b16 %v43
    %v172 = vunpack.c.l.b16 %v44
    %v173 = vunpack.c.l.b16 %v45
    %v174 = vunpack.c.l.b16 %v46
    %v175 = vunpack.c.l.b16 %v47
    %v176 = vunpack.c.l.b16 %v48
    %v177 = vunpack.c.l.b16 %v49
    %v178 = vunpack.c.l.b16 %v50
    %v179 = vunpack.c.l.b16 %v51
    %v180 = vunpack.c.l.b16 %v52
    %v181 = vunpack.c.l.b16 %v53
    %v182 = vunpack.c.l.b16 %v54
    %v183 = vunpack.c.l.b16 %v55
    %v184 = vpack.c.b16 %v169, %v168
    %v185 = vpack.c.b16 %v171, %v170
    %v186 = vpack.c.b16 %v173, %v172
    %v187 = vpack.c.b16 %v175, %v174
    %v188 = vpack.c.b16 %v177, %v176
    %v189 = vpack.c.b16 %v179, %v178
    %v190 = vpack.c.b16 %v181, %v180
    %v191 = vpack.c.b16 %v183, %v182
    %vm192 = vcmask 130048
    %v194 = vsel %vm192, %v184, 0
    %v197 = vsel %vm192, %v185, 0
    %v200 = vsel %vm192, %v186, 0
    %v203 = vsel %vm192, %v187, 0
    %v206 = vsel %vm192, %v188, 0
    %v209 = vsel %vm192, %v189, 0
    %v212 = vsel %vm192, %v190, 0
    %v215 = vsel %vm192, %v191, 0
    %217 = vmatprep.subr.bf16.mxu0 0
    %218 = vmatpush1.bf16.msra.mxu0 %v38
    %219 = vmatprep.subr.bf16.mxu0 0
    %220 = vmatpush1.bf16.msra.mxu0 0
    %221 = vmatprep.subr.bf16.mxu0 0
    %222 = vmatpush1.bf16.msra.mxu0 0
    %223 = vmatprep.subr.bf16.mxu0 0
    %224 = vmatpush1.bf16.msra.mxu0 0
    %225 = vmatprep.subr.bf16.mxu0 0
    %226 = vmatpush1.bf16.msra.mxu0 0
    %227 = vmatprep.subr.bf16.mxu0 0
    %228 = vmatpush1.bf16.msra.mxu0 0
    %229 = vmatprep.subr.bf16.mxu0 0
    %230 = vmatpush1.bf16.msra.mxu0 0
    %231 = vmatprep.subr.bf16.mxu0 0
    %232 = vmatpush1.bf16.msra.mxu0 0
    %233 = vmatprep.subr.bf16.mxu0 0
    %234 = vmatpush1.bf16.msra.mxu0 0
    %235 = vmatprep.subr.bf16.mxu0 0
    %236 = vmatpush1.bf16.msra.mxu0 0
    %237 = vmatprep.subr.bf16.mxu0 0
    %238 = vmatpush1.bf16.msra.mxu0 0
    %239 = vmatprep.subr.bf16.mxu0 0
    %240 = vmatpush1.bf16.msra.mxu0 0
    %241 = vmatprep.subr.bf16.mxu0 0
    %242 = vmatpush1.bf16.msra.mxu0 0
    %243 = vmatprep.subr.bf16.mxu0 0
    %244 = vmatpush1.bf16.msra.mxu0 0
    %245 = vmatprep.subr.bf16.mxu0 0
    %246 = vmatpush1.bf16.msra.mxu0 0
    %247 = vmatprep.subr.bf16.mxu0 0
    %248 = vmatpush1.bf16.msra.mxu0 0
    %249 = vmatprep.mubr.bf16.mxu0 0
    %250 = vmatmul.mubr.bf16.gmra.mrb[0].mxu0 %v194
    %v251 = vpop.f32.mrb[0].mxu0
    %v252 = vadd.f32 %v75, %v251
    %v253 = vpop.f32.mrb[0].mxu0
    %v254 = vpop.f32.mrb[0].mxu0
    %v255 = vadd.f32 %v80, %v254
    %v256 = vpop.f32.mrb[0].mxu0
    %257 = vmatprep.mubr.bf16.mxu0 0
    %258 = vmatmul.mubr.bf16.gmra.mrb[0].mxu0 %v197
    %v259 = vpop.f32.mrb[0].mxu0
    %v260 = vadd.f32 %v85, %v259
    %v261 = vpop.f32.mrb[0].mxu0
    %v262 = vpop.f32.mrb[0].mxu0
    %v263 = vadd.f32 %v90, %v262
    %v264 = vpop.f32.mrb[0].mxu0
    %265 = vmatprep.mubr.bf16.mxu0 0
    %266 = vmatmul.mubr.bf16.gmra.mrb[0].mxu0 %v200
    %v267 = vpop.f32.mrb[0].mxu0
    %v268 = vadd.f32 %v95, %v267
    %v269 = vpop.f32.mrb[0].mxu0
    %v270 = vpop.f32.mrb[0].mxu0
    %v271 = vadd.f32 %v100, %v270
    %v272 = vpop.f32.mrb[0].mxu0
    %273 = vmatprep.mubr.bf16.mxu0 0
    %274 = vmatmul.mubr.bf16.gmra.mrb[0].mxu0 %v203
    %v275 = vpop.f32.mrb[0].mxu0
    %v276 = vadd.f32 %v105, %v275
    %v277 = vpop.f32.mrb[0].mxu0
    %v278 = vpop.f32.mrb[0].mxu0
    %v279 = vadd.f32 %v110, %v278
    %v280 = vpop.f32.mrb[0].mxu0
    %281 = vmatprep.mubr.bf16.mxu0 0
    %282 = vmatmul.mubr.bf16.gmra.mrb[0].mxu0 %v206
    %v283 = vpop.f32.mrb[0].mxu0
    %v284 = vadd.f32 %v115, %v283
    %v285 = vpop.f32.mrb[0].mxu0
    %v286 = vpop.f32.mrb[0].mxu0
    %v287 = vadd.f32 %v120, %v286
    %v288 = vpop.f32.mrb[0].mxu0
    %289 = vmatprep.mubr.bf16.mxu0 0
    %290 = vmatmul.mubr.bf16.gmra.mrb[0].mxu0 %v209
    %v291 = vpop.f32.mrb[0].mxu0
    %v292 = vadd.f32 %v125, %v291
    %v293 = vpop.f32.mrb[0].mxu0
    %v294 = vpop.f32.mrb[0].mxu0
    %v295 = vadd.f32 %v130, %v294
    %v296 = vpop.f32.mrb[0].mxu0
    %297 = vmatprep.mubr.bf16.mxu0 0
    %298 = vmatmul.mubr.bf16.gmra.mrb[0].mxu0 %v212
    %v299 = vpop.f32.mrb[0].mxu0
    %v300 = vadd.f32 %v135, %v299
    %v301 = vpop.f32.mrb[0].mxu0
    %v302 = vpop.f32.mrb[0].mxu0
    %v303 = vadd.f32 %v140, %v302
    %v304 = vpop.f32.mrb[0].mxu0
    %305 = vmatprep.mubr.bf16.mxu0 0
    %306 = vmatmul.mubr.bf16.gmra.mrb[0].mxu0 %v215
    %v307 = vpop.f32.mrb[0].mxu0
    %v308 = vadd.f32 %v145, %v307
    %v309 = vpop.f32.mrb[0].mxu0
    %v310 = vpop.f32.mrb[0].mxu0
    %v311 = vadd.f32 %v150, %v310
    %v312 = vpop.f32.mrb[0].mxu0
    %313 = vdwg.mxu0
    %v314 = vmul.f32 %v252, 0.5
    %v315 = vmul.f32 %v255, 0.5
    %v316 = vmul.f32 %v260, 0.5
    %v317 = vmul.f32 %v263, 0.5
    %v318 = vmul.f32 %v268, 0.5
    %v319 = vmul.f32 %v271, 0.5
    %v320 = vmul.f32 %v276, 0.5
    %v321 = vmul.f32 %v279, 0.5
    %v322 = vmul.f32 %v284, 0.5
    %v323 = vmul.f32 %v287, 0.5
    %v324 = vmul.f32 %v292, 0.5
    %v325 = vmul.f32 %v295, 0.5
    %v326 = vmul.f32 %v300, 0.5
    %v327 = vmul.f32 %v303, 0.5
    %v328 = vmul.f32 %v308, 0.5
    %v329 = vmul.f32 %v311, 0.5
    %v330 = vtanh.pop %v314
    %v331 = vtanh.pop %v315
    %v332 = vtanh.pop %v316
    %v333 = vtanh.pop %v317
    %v334 = vtanh.pop %v318
    %v335 = vtanh.pop %v319
    %v336 = vtanh.pop %v320
    %v337 = vtanh.pop %v321
    %v338 = vtanh.pop %v322
    %v339 = vtanh.pop %v323
    %v340 = vtanh.pop %v324
    %v341 = vtanh.pop %v325
    %v342 = vtanh.pop %v326
    %v343 = vtanh.pop %v327
    %v344 = vtanh.pop %v328
    %v345 = vtanh.pop %v329
    %v346 = vmul.f32 %v330, 0.5
    %v347 = vmul.f32 %v331, 0.5
    %v348 = vmul.f32 %v332, 0.5
    %v349 = vmul.f32 %v333, 0.5
    %v350 = vmul.f32 %v334, 0.5
    %v351 = vmul.f32 %v335, 0.5
    %v352 = vmul.f32 %v336, 0.5
    %v353 = vmul.f32 %v337, 0.5
    %v354 = vmul.f32 %v338, 0.5
    %v355 = vmul.f32 %v339, 0.5
    %v356 = vmul.f32 %v340, 0.5
    %v357 = vmul.f32 %v341, 0.5
    %v358 = vmul.f32 %v342, 0.5
    %v359 = vmul.f32 %v343, 0.5
    %v360 = vmul.f32 %v344, 0.5
    %v361 = vmul.f32 %v345, 0.5
    %v362 = vadd.f32 %v346, 0.5
    %v363 = vadd.f32 %v347, 0.5
    %v364 = vadd.f32 %v348, 0.5
    %v365 = vadd.f32 %v349, 0.5
    %v366 = vadd.f32 %v350, 0.5
    %v367 = vadd.f32 %v351, 0.5
    %v368 = vadd.f32 %v352, 0.5
    %v369 = vadd.f32 %v353, 0.5
    %v370 = vadd.f32 %v354, 0.5
    %v371 = vadd.f32 %v355, 0.5
    %v372 = vadd.f32 %v356, 0.5
    %v373 = vadd.f32 %v357, 0.5
    %v374 = vadd.f32 %v358, 0.5
    %v375 = vadd.f32 %v359, 0.5
    %v376 = vadd.f32 %v360, 0.5
    %v377 = vadd.f32 %v361, 0.5
    %v378 = vpack.c.bf16 %v363, %v362
    %v379 = vpack.c.bf16 %v365, %v364
    %v380 = vpack.c.bf16 %v367, %v366
    %v381 = vpack.c.bf16 %v369, %v368
    %v382 = vpack.c.bf16 %v371, %v370
    %v383 = vpack.c.bf16 %v373, %v372
    %v384 = vpack.c.bf16 %v375, %v374
    %v385 = vpack.c.bf16 %v377, %v376
    %386 = vmatprep.subr.bf16.mxu0 0
    %387 = vmatpush1.bf16.msra.mxu0 %v39
    %388 = vmatprep.subr.bf16.mxu0 0
    %389 = vmatpush1.bf16.msra.mxu0 0
    %390 = vmatprep.subr.bf16.mxu0 0
    %391 = vmatpush1.bf16.msra.mxu0 0
    %392 = vmatprep.subr.bf16.mxu0 0
    %393 = vmatpush1.bf16.msra.mxu0 0
    %394 = vmatprep.subr.bf16.mxu0 0
    %395 = vmatpush1.bf16.msra.mxu0 0
    %396 = vmatprep.subr.bf16.mxu0 0
    %397 = vmatpush1.bf16.msra.mxu0 0
    %398 = vmatprep.subr.bf16.mxu0 0
    %399 = vmatpush1.bf16.msra.mxu0 0
    %400 = vmatprep.subr.bf16.mxu0 0
    %401 = vmatpush1.bf16.msra.mxu0 0
    %402 = vmatprep.subr.bf16.mxu0 0
    %403 = vmatpush1.bf16.msra.mxu0 0
    %404 = vmatprep.subr.bf16.mxu0 0
    %405 = vmatpush1.bf16.msra.mxu0 0
    %406 = vmatprep.subr.bf16.mxu0 0
    %407 = vmatpush1.bf16.msra.mxu0 0
    %408 = vmatprep.subr.bf16.mxu0 0
    %409 = vmatpush1.bf16.msra.mxu0 0
    %410 = vmatprep.subr.bf16.mxu0 0
    %411 = vmatpush1.bf16.msra.mxu0 0
    %412 = vmatprep.subr.bf16.mxu0 0
    %413 = vmatpush1.bf16.msra.mxu0 0
    %414 = vmatprep.subr.bf16.mxu0 0
    %415 = vmatpush1.bf16.msra.mxu0 0
    %416 = vmatprep.subr.bf16.mxu0 0
    %417 = vmatpush1.bf16.msra.mxu0 0
    %418 = vmatprep.mubr.bf16.mxu0 0
    %419 = vmatmul.mubr.bf16.gmra.mrb[0].mxu0 %v194
    %v420 = vpop.f32.mrb[0].mxu0
    %v421 = vadd.f32 %v75, %v420
    %v422 = vpop.f32.mrb[0].mxu0
    %v423 = vpop.f32.mrb[0].mxu0
    %v424 = vadd.f32 %v80, %v423
    %v425 = vpop.f32.mrb[0].mxu0
    %426 = vmatprep.mubr.bf16.mxu0 0
    %427 = vmatmul.mubr.bf16.gmra.mrb[0].mxu0 %v197
    %v428 = vpop.f32.mrb[0].mxu0
    %v429 = vadd.f32 %v85, %v428
    %v430 = vpop.f32.mrb[0].mxu0
    %v431 = vpop.f32.mrb[0].mxu0
    %v432 = vadd.f32 %v90, %v431
    %v433 = vpop.f32.mrb[0].mxu0
    %434 = vmatprep.mubr.bf16.mxu0 0
    %435 = vmatmul.mubr.bf16.gmra.mrb[0].mxu0 %v200
    %v436 = vpop.f32.mrb[0].mxu0
    %v437 = vadd.f32 %v95, %v436
    %v438 = vpop.f32.mrb[0].mxu0
    %v439 = vpop.f32.mrb[0].mxu0
    %v440 = vadd.f32 %v100, %v439
    %v441 = vpop.f32.mrb[0].mxu0
    %442 = vmatprep.mubr.bf16.mxu0 0
    %443 = vmatmul.mubr.bf16.gmra.mrb[0].mxu0 %v203
    %v444 = vpop.f32.mrb[0].mxu0
    %v445 = vadd.f32 %v105, %v444
    %v446 = vpop.f32.mrb[0].mxu0
    %v447 = vpop.f32.mrb[0].mxu0
    %v448 = vadd.f32 %v110, %v447
    %v449 = vpop.f32.mrb[0].mxu0
    %450 = vmatprep.mubr.bf16.mxu0 0
    %451 = vmatmul.mubr.bf16.gmra.mrb[0].mxu0 %v206
    %v452 = vpop.f32.mrb[0].mxu0
    %v453 = vadd.f32 %v115, %v452
    %v454 = vpop.f32.mrb[0].mxu0
    %v455 = vpop.f32.mrb[0].mxu0
    %v456 = vadd.f32 %v120, %v455
    %v457 = vpop.f32.mrb[0].mxu0
    %458 = vmatprep.mubr.bf16.mxu0 0
    %459 = vmatmul.mubr.bf16.gmra.mrb[0].mxu0 %v209
    %v460 = vpop.f32.mrb[0].mxu0
    %v461 = vadd.f32 %v125, %v460
    %v462 = vpop.f32.mrb[0].mxu0
    %v463 = vpop.f32.mrb[0].mxu0
    %v464 = vadd.f32 %v130, %v463
    %v465 = vpop.f32.mrb[0].mxu0
    %466 = vmatprep.mubr.bf16.mxu0 0
    %467 = vmatmul.mubr.bf16.gmra.mrb[0].mxu0 %v212
    %v468 = vpop.f32.mrb[0].mxu0
    %v469 = vadd.f32 %v135, %v468
    %v470 = vpop.f32.mrb[0].mxu0
    %v471 = vpop.f32.mrb[0].mxu0
    %v472 = vadd.f32 %v140, %v471
    %v473 = vpop.f32.mrb[0].mxu0
    %474 = vmatprep.mubr.bf16.mxu0 0
    %475 = vmatmul.mubr.bf16.gmra.mrb[0].mxu0 %v215
    %v476 = vpop.f32.mrb[0].mxu0
    %v477 = vadd.f32 %v145, %v476
    %v478 = vpop.f32.mrb[0].mxu0
    %v479 = vpop.f32.mrb[0].mxu0
    %v480 = vadd.f32 %v150, %v479
    %v481 = vpop.f32.mrb[0].mxu0
    %482 = vdwg.mxu0
    %v483 = vmul.f32 %v421, 0.5
    %v484 = vmul.f32 %v424, 0.5
    %v485 = vmul.f32 %v429, 0.5
    %v486 = vmul.f32 %v432, 0.5
    %v487 = vmul.f32 %v437, 0.5
    %v488 = vmul.f32 %v440, 0.5
    %v489 = vmul.f32 %v445, 0.5
    %v490 = vmul.f32 %v448, 0.5
    %v491 = vmul.f32 %v453, 0.5
    %v492 = vmul.f32 %v456, 0.5
    %v493 = vmul.f32 %v461, 0.5
    %v494 = vmul.f32 %v464, 0.5
    %v495 = vmul.f32 %v469, 0.5
    %v496 = vmul.f32 %v472, 0.5
    %v497 = vmul.f32 %v477, 0.5
    %v498 = vmul.f32 %v480, 0.5
    %v499 = vtanh.pop %v483
    %v500 = vtanh.pop %v484
    %v501 = vtanh.pop %v485
    %v502 = vtanh.pop %v486
    %v503 = vtanh.pop %v487
    %v504 = vtanh.pop %v488
    %v505 = vtanh.pop %v489
    %v506 = vtanh.pop %v490
    %v507 = vtanh.pop %v491
    %v508 = vtanh.pop %v492
    %v509 = vtanh.pop %v493
    %v510 = vtanh.pop %v494
    %v511 = vtanh.pop %v495
    %v512 = vtanh.pop %v496
    %v513 = vtanh.pop %v497
    %v514 = vtanh.pop %v498
    %v515 = vmul.f32 %v499, 0.5
    %v516 = vmul.f32 %v500, 0.5
    %v517 = vmul.f32 %v501, 0.5
    %v518 = vmul.f32 %v502, 0.5
    %v519 = vmul.f32 %v503, 0.5
    %v520 = vmul.f32 %v504, 0.5
    %v521 = vmul.f32 %v505, 0.5
    %v522 = vmul.f32 %v506, 0.5
    %v523 = vmul.f32 %v507, 0.5
    %v524 = vmul.f32 %v508, 0.5
    %v525 = vmul.f32 %v509, 0.5
    %v526 = vmul.f32 %v510, 0.5
    %v527 = vmul.f32 %v511, 0.5
    %v528 = vmul.f32 %v512, 0.5
    %v529 = vmul.f32 %v513, 0.5
    %v530 = vmul.f32 %v514, 0.5
    %v531 = vadd.f32 %v515, 0.5
    %v532 = vadd.f32 %v516, 0.5
    %v533 = vadd.f32 %v517, 0.5
    %v534 = vadd.f32 %v518, 0.5
    %v535 = vadd.f32 %v519, 0.5
    %v536 = vadd.f32 %v520, 0.5
    %v537 = vadd.f32 %v521, 0.5
    %v538 = vadd.f32 %v522, 0.5
    %v539 = vadd.f32 %v523, 0.5
    %v540 = vadd.f32 %v524, 0.5
    %v541 = vadd.f32 %v525, 0.5
    %v542 = vadd.f32 %v526, 0.5
    %v543 = vadd.f32 %v527, 0.5
    %v544 = vadd.f32 %v528, 0.5
    %v545 = vadd.f32 %v529, 0.5
    %v546 = vadd.f32 %v530, 0.5
    %v547 = vpack.c.bf16 %v532, %v531
    %v548 = vpack.c.bf16 %v534, %v533
    %v549 = vpack.c.bf16 %v536, %v535
    %v550 = vpack.c.bf16 %v538, %v537
    %v551 = vpack.c.bf16 %v540, %v539
    %v552 = vpack.c.bf16 %v542, %v541
    %v553 = vpack.c.bf16 %v544, %v543
    %v554 = vpack.c.bf16 %v546, %v545
    %v555 = vld [vmem:[%s3] sm:$0xf]
    %v556 = vld [vmem:[%s3 + $0x4] sm:$0xf]
    %v557 = vld [vmem:[%s3 + $0x8] sm:$0xf]
    %v558 = vld [vmem:[%s3 + $0xc] sm:$0xf]
    %v559 = vld [vmem:[%s3 + $0x10] sm:$0xf]
    %v560 = vld [vmem:[%s3 + $0x14] sm:$0xf]
    %v561 = vld [vmem:[%s3 + $0x18] sm:$0xf]
    %v562 = vld [vmem:[%s3 + $0x1c] sm:$0xf]
    %v563 = vld [vmem:[%s4] sm:$0xff]
    %v564 = vld [vmem:[%s4 + $0x8] sm:$0xff]
    %v565 = vld [vmem:[%s4 + $0x10] sm:$0xff]
    %v566 = vld [vmem:[%s4 + $0x18] sm:$0xff]
    %v567 = vld [vmem:[%s4 + $0x20] sm:$0xff]
    %v568 = vld [vmem:[%s4 + $0x28] sm:$0xff]
    %v569 = vld [vmem:[%s4 + $0x30] sm:$0xff]
    %v570 = vld [vmem:[%s4 + $0x38] sm:$0xff]
    %572 = vset.pattern.permute.xlu0 0
    %573 = vperm.xlu0 %572, %v563
    %v574 = vpop.permute.xlu0 %573
    %577 = vset.pattern.permute.xlu0 0
    %578 = vperm.xlu0 %577, %v564
    %v579 = vpop.permute.xlu0 %578
    %582 = vset.pattern.permute.xlu0 0
    %583 = vperm.xlu0 %582, %v565
    %v584 = vpop.permute.xlu0 %583
    %587 = vset.pattern.permute.xlu0 0
    %588 = vperm.xlu0 %587, %v566
    %v589 = vpop.permute.xlu0 %588
    %592 = vset.pattern.permute.xlu0 0
    %593 = vperm.xlu0 %592, %v567
    %v594 = vpop.permute.xlu0 %593
    %597 = vset.pattern.permute.xlu0 0
    %598 = vperm.xlu0 %597, %v568
    %v599 = vpop.permute.xlu0 %598
    %602 = vset.pattern.permute.xlu0 0
    %603 = vperm.xlu0 %602, %v569
    %v604 = vpop.permute.xlu0 %603
    %607 = vset.pattern.permute.xlu0 0
    %608 = vperm.xlu0 %607, %v570
    %v609 = vpop.permute.xlu0 %608
    %v619 = vunpack.c.l.b16 %v555
    %v620 = vunpack.c.l.b16 %v556
    %v621 = vunpack.c.l.b16 %v557
    %v622 = vunpack.c.l.b16 %v558
    %v623 = vunpack.c.l.b16 %v559
    %v624 = vunpack.c.l.b16 %v560
    %v625 = vunpack.c.l.b16 %v561
    %v626 = vunpack.c.l.b16 %v562
    %v627 = vpack.c.b16 %v620, %v619
    %v628 = vpack.c.b16 %v622, %v621
    %v629 = vpack.c.b16 %v624, %v623
    %v630 = vpack.c.b16 %v626, %v625
    %635 = vmatprep.subr.bf16.mxu0 0
    %636 = vmatpush1.bf16.msra.mxu0 %v378
    %637 = vmatprep.subr.bf16.mxu0 0
    %638 = vmatpush1.bf16.msra.mxu0 %v379
    %639 = vmatprep.subr.bf16.mxu0 0
    %640 = vmatpush1.bf16.msra.mxu0 %v380
    %641 = vmatprep.subr.bf16.mxu0 0
    %642 = vmatpush1.bf16.msra.mxu0 %v381
    %643 = vmatprep.subr.bf16.mxu0 0
    %644 = vmatpush1.bf16.msra.mxu0 %v382
    %645 = vmatprep.subr.bf16.mxu0 0
    %646 = vmatpush1.bf16.msra.mxu0 %v383
    %647 = vmatprep.subr.bf16.mxu0 0
    %648 = vmatpush1.bf16.msra.mxu0 %v384
    %649 = vmatprep.subr.bf16.mxu0 0
    %650 = vmatpush1.bf16.msra.mxu0 %v385
    %651 = vmatprep.subr.bf16.mxu0 0
    %652 = vmatpush1.bf16.msra.mxu0 0
    %653 = vmatprep.subr.bf16.mxu0 0
    %654 = vmatpush1.bf16.msra.mxu0 0
    %655 = vmatprep.subr.bf16.mxu0 0
    %656 = vmatpush1.bf16.msra.mxu0 0
    %657 = vmatprep.subr.bf16.mxu0 0
    %658 = vmatpush1.bf16.msra.mxu0 0
    %659 = vmatprep.subr.bf16.mxu0 0
    %660 = vmatpush1.bf16.msra.mxu0 0
    %661 = vmatprep.subr.bf16.mxu0 0
    %662 = vmatpush1.bf16.msra.mxu0 0
    %663 = vmatprep.subr.bf16.mxu0 0
    %664 = vmatpush1.bf16.msra.mxu0 0
    %665 = vmatprep.subr.bf16.mxu0 0
    %666 = vmatpush1.bf16.msra.mxu0 0
    %667 = vmatprep.mubr.bf16.mxu0 0
    %668 = vmatmul.mubr.bf16.gmra.mrb[0].mxu0 %v627
    %v669 = vpop.f32.mrb[0].mxu0
    %v670 = vadd.f32 %v574, %v669
    %v671 = vpop.f32.mrb[0].mxu0
    %v672 = vpop.f32.mrb[0].mxu0
    %v673 = vadd.f32 %v579, %v672
    %v674 = vpop.f32.mrb[0].mxu0
    %675 = vmatprep.mubr.bf16.mxu0 0
    %676 = vmatmul.mubr.bf16.gmra.mrb[0].mxu0 %v628
    %v677 = vpop.f32.mrb[0].mxu0
    %v678 = vadd.f32 %v584, %v677
    %v679 = vpop.f32.mrb[0].mxu0
    %v680 = vpop.f32.mrb[0].mxu0
    %v681 = vadd.f32 %v589, %v680
    %v682 = vpop.f32.mrb[0].mxu0
    %683 = vmatprep.mubr.bf16.mxu0 0
    %684 = vmatmul.mubr.bf16.gmra.mrb[0].mxu0 %v629
    %v685 = vpop.f32.mrb[0].mxu0
    %v686 = vadd.f32 %v594, %v685
    %v687 = vpop.f32.mrb[0].mxu0
    %v688 = vpop.f32.mrb[0].mxu0
    %v689 = vadd.f32 %v599, %v688
    %v690 = vpop.f32.mrb[0].mxu0
    %691 = vmatprep.mubr.bf16.mxu0 0
    %692 = vmatmul.mubr.bf16.gmra.mrb[0].mxu0 %v630
    %v693 = vpop.f32.mrb[0].mxu0
    %v694 = vadd.f32 %v604, %v693
    %v695 = vpop.f32.mrb[0].mxu0
    %v696 = vpop.f32.mrb[0].mxu0
    %v697 = vadd.f32 %v609, %v696
    %v698 = vpop.f32.mrb[0].mxu0
    %699 = vdwg.mxu0
    %v700 = vmul.f32 %v670, 0.5
    %v701 = vmul.f32 %v673, 0.5
    %v702 = vmul.f32 %v678, 0.5
    %v703 = vmul.f32 %v681, 0.5
    %v704 = vmul.f32 %v686, 0.5
    %v705 = vmul.f32 %v689, 0.5
    %v706 = vmul.f32 %v694, 0.5
    %v707 = vmul.f32 %v697, 0.5
    %v708 = vtanh.pop %v700
    %v709 = vtanh.pop %v701
    %v710 = vtanh.pop %v702
    %v711 = vtanh.pop %v703
    %v712 = vtanh.pop %v704
    %v713 = vtanh.pop %v705
    %v714 = vtanh.pop %v706
    %v715 = vtanh.pop %v707
    %v716 = vmul.f32 %v708, 0.5
    %v717 = vmul.f32 %v709, 0.5
    %v718 = vmul.f32 %v710, 0.5
    %v719 = vmul.f32 %v711, 0.5
    %v720 = vmul.f32 %v712, 0.5
    %v721 = vmul.f32 %v713, 0.5
    %v722 = vmul.f32 %v714, 0.5
    %v723 = vmul.f32 %v715, 0.5
    %v724 = vadd.f32 %v716, 0.5
    %v725 = vadd.f32 %v717, 0.5
    %v726 = vadd.f32 %v718, 0.5
    %v727 = vadd.f32 %v719, 0.5
    %v728 = vadd.f32 %v720, 0.5
    %v729 = vadd.f32 %v721, 0.5
    %v730 = vadd.f32 %v722, 0.5
    %v731 = vadd.f32 %v723, 0.5
    %v732 = vpack.c.bf16 %v725, %v724
    %v733 = vpack.c.bf16 %v727, %v726
    %v734 = vpack.c.bf16 %v729, %v728
    %v735 = vpack.c.bf16 %v731, %v730
    %736 = vmatprep.subr.bf16.mxu0 0
    %737 = vmatpush1.bf16.msra.mxu0 %v547
    %738 = vmatprep.subr.bf16.mxu0 0
    %739 = vmatpush1.bf16.msra.mxu0 %v548
    %740 = vmatprep.subr.bf16.mxu0 0
    %741 = vmatpush1.bf16.msra.mxu0 %v549
    %742 = vmatprep.subr.bf16.mxu0 0
    %743 = vmatpush1.bf16.msra.mxu0 %v550
    %744 = vmatprep.subr.bf16.mxu0 0
    %745 = vmatpush1.bf16.msra.mxu0 %v551
    %746 = vmatprep.subr.bf16.mxu0 0
    %747 = vmatpush1.bf16.msra.mxu0 %v552
    %748 = vmatprep.subr.bf16.mxu0 0
    %749 = vmatpush1.bf16.msra.mxu0 %v553
    %750 = vmatprep.subr.bf16.mxu0 0
    %751 = vmatpush1.bf16.msra.mxu0 %v554
    %752 = vmatprep.subr.bf16.mxu0 0
    %753 = vmatpush1.bf16.msra.mxu0 0
    %754 = vmatprep.subr.bf16.mxu0 0
    %755 = vmatpush1.bf16.msra.mxu0 0
    %756 = vmatprep.subr.bf16.mxu0 0
    %757 = vmatpush1.bf16.msra.mxu0 0
    %758 = vmatprep.subr.bf16.mxu0 0
    %759 = vmatpush1.bf16.msra.mxu0 0
    %760 = vmatprep.subr.bf16.mxu0 0
    %761 = vmatpush1.bf16.msra.mxu0 0
    %762 = vmatprep.subr.bf16.mxu0 0
    %763 = vmatpush1.bf16.msra.mxu0 0
    %764 = vmatprep.subr.bf16.mxu0 0
    %765 = vmatpush1.bf16.msra.mxu0 0
    %766 = vmatprep.subr.bf16.mxu0 0
    %767 = vmatpush1.bf16.msra.mxu0 0
    %768 = vmatprep.mubr.bf16.mxu0 0
    %769 = vmatmul.mubr.bf16.gmra.mrb[0].mxu0 %v627
    %v770 = vpop.f32.mrb[0].mxu0
    %v771 = vadd.f32 %v574, %v770
    %v772 = vpop.f32.mrb[0].mxu0
    %v773 = vpop.f32.mrb[0].mxu0
    %v774 = vadd.f32 %v579, %v773
    %v775 = vpop.f32.mrb[0].mxu0
    %776 = vmatprep.mubr.bf16.mxu0 0
    %777 = vmatmul.mubr.bf16.gmra.mrb[0].mxu0 %v628
    %v778 = vpop.f32.mrb[0].mxu0
    %v779 = vadd.f32 %v584, %v778
    %v780 = vpop.f32.mrb[0].mxu0
    %v781 = vpop.f32.mrb[0].mxu0
    %v782 = vadd.f32 %v589, %v781
    %v783 = vpop.f32.mrb[0].mxu0
    %784 = vmatprep.mubr.bf16.mxu0 0
    %785 = vmatmul.mubr.bf16.gmra.mrb[0].mxu0 %v629
    %v786 = vpop.f32.mrb[0].mxu0
    %v787 = vadd.f32 %v594, %v786
    %v788 = vpop.f32.mrb[0].mxu0
    %v789 = vpop.f32.mrb[0].mxu0
    %v790 = vadd.f32 %v599, %v789
    %v791 = vpop.f32.mrb[0].mxu0
    %792 = vmatprep.mubr.bf16.mxu0 0
    %793 = vmatmul.mubr.bf16.gmra.mrb[0].mxu0 %v630
    %v794 = vpop.f32.mrb[0].mxu0
    %v795 = vadd.f32 %v604, %v794
    %v796 = vpop.f32.mrb[0].mxu0
    %v797 = vpop.f32.mrb[0].mxu0
    %v798 = vadd.f32 %v609, %v797
    %v799 = vpop.f32.mrb[0].mxu0
    %800 = vdwg.mxu0
    %v801 = vmul.f32 %v771, 0.5
    %v802 = vmul.f32 %v774, 0.5
    %v803 = vmul.f32 %v779, 0.5
    %v804 = vmul.f32 %v782, 0.5
    %v805 = vmul.f32 %v787, 0.5
    %v806 = vmul.f32 %v790, 0.5
    %v807 = vmul.f32 %v795, 0.5
    %v808 = vmul.f32 %v798, 0.5
    %v809 = vtanh.pop %v801
    %v810 = vtanh.pop %v802
    %v811 = vtanh.pop %v803
    %v812 = vtanh.pop %v804
    %v813 = vtanh.pop %v805
    %v814 = vtanh.pop %v806
    %v815 = vtanh.pop %v807
    %v816 = vtanh.pop %v808
    %v817 = vmul.f32 %v809, 0.5
    %v818 = vmul.f32 %v810, 0.5
    %v819 = vmul.f32 %v811, 0.5
    %v820 = vmul.f32 %v812, 0.5
    %v821 = vmul.f32 %v813, 0.5
    %v822 = vmul.f32 %v814, 0.5
    %v823 = vmul.f32 %v815, 0.5
    %v824 = vmul.f32 %v816, 0.5
    %v825 = vadd.f32 %v817, 0.5
    %v826 = vadd.f32 %v818, 0.5
    %v827 = vadd.f32 %v819, 0.5
    %v828 = vadd.f32 %v820, 0.5
    %v829 = vadd.f32 %v821, 0.5
    %v830 = vadd.f32 %v822, 0.5
    %v831 = vadd.f32 %v823, 0.5
    %v832 = vadd.f32 %v824, 0.5
    %v833 = vpack.c.bf16 %v826, %v825
    %v834 = vpack.c.bf16 %v828, %v827
    %v835 = vpack.c.bf16 %v830, %v829
    %v836 = vpack.c.bf16 %v832, %v831
    %v837 = vld [vmem:[%s5] sm:$0xf]
    %v838 = vld [vmem:[%s5 + $0x4] sm:$0xf]
    %v839 = vld [vmem:[%s5 + $0x8] sm:$0xf]
    %v840 = vld [vmem:[%s5 + $0xc] sm:$0xf]
    %v841 = vld [vmem:[%s6] sm:$0xff]
    %v842 = vld [vmem:[%s6 + $0x8] sm:$0xff]
    %v843 = vld [vmem:[%s6 + $0x10] sm:$0xff]
    %v844 = vld [vmem:[%s6 + $0x18] sm:$0xff]
    %846 = vset.pattern.permute.xlu0 0
    %847 = vperm.xlu0 %846, %v841
    %v848 = vpop.permute.xlu0 %847
    %851 = vset.pattern.permute.xlu0 0
    %852 = vperm.xlu0 %851, %v842
    %v853 = vpop.permute.xlu0 %852
    %856 = vset.pattern.permute.xlu0 0
    %857 = vperm.xlu0 %856, %v843
    %v858 = vpop.permute.xlu0 %857
    %861 = vset.pattern.permute.xlu0 0
    %862 = vperm.xlu0 %861, %v844
    %v863 = vpop.permute.xlu0 %862
    %v869 = vunpack.c.l.b16 %v837
    %v870 = vunpack.c.l.b16 %v838
    %v871 = vunpack.c.l.b16 %v839
    %v872 = vunpack.c.l.b16 %v840
    %v873 = vpack.c.b16 %v870, %v869
    %v874 = vpack.c.b16 %v872, %v871
    %vm875 = vcmask 523264
    %v877 = vsel %vm875, %v873, 0
    %v880 = vsel %vm875, %v874, 0
    %882 = vmatprep.subr.bf16.mxu0 0
    %883 = vmatpush1.bf16.msra.mxu0 %v732
    %884 = vmatprep.subr.bf16.mxu0 0
    %885 = vmatpush1.bf16.msra.mxu0 %v733
    %886 = vmatprep.subr.bf16.mxu0 0
    %887 = vmatpush1.bf16.msra.mxu0 %v734
    %888 = vmatprep.subr.bf16.mxu0 0
    %889 = vmatpush1.bf16.msra.mxu0 %v735
    %890 = vmatprep.subr.bf16.mxu0 0
    %891 = vmatpush1.bf16.msra.mxu0 0
    %892 = vmatprep.subr.bf16.mxu0 0
    %893 = vmatpush1.bf16.msra.mxu0 0
    %894 = vmatprep.subr.bf16.mxu0 0
    %895 = vmatpush1.bf16.msra.mxu0 0
    %896 = vmatprep.subr.bf16.mxu0 0
    %897 = vmatpush1.bf16.msra.mxu0 0
    %898 = vmatprep.subr.bf16.mxu0 0
    %899 = vmatpush1.bf16.msra.mxu0 0
    %900 = vmatprep.subr.bf16.mxu0 0
    %901 = vmatpush1.bf16.msra.mxu0 0
    %902 = vmatprep.subr.bf16.mxu0 0
    %903 = vmatpush1.bf16.msra.mxu0 0
    %904 = vmatprep.subr.bf16.mxu0 0
    %905 = vmatpush1.bf16.msra.mxu0 0
    %906 = vmatprep.subr.bf16.mxu0 0
    %907 = vmatpush1.bf16.msra.mxu0 0
    %908 = vmatprep.subr.bf16.mxu0 0
    %909 = vmatpush1.bf16.msra.mxu0 0
    %910 = vmatprep.subr.bf16.mxu0 0
    %911 = vmatpush1.bf16.msra.mxu0 0
    %912 = vmatprep.subr.bf16.mxu0 0
    %913 = vmatpush1.bf16.msra.mxu0 0
    %914 = vmatprep.mubr.bf16.mxu0 0
    %915 = vmatmul.mubr.bf16.gmra.mrb[0].mxu0 %v877
    %v916 = vpop.f32.mrb[0].mxu0
    %v917 = vadd.f32 %v848, %v916
    %v918 = vpop.f32.mrb[0].mxu0
    %v919 = vpop.f32.mrb[0].mxu0
    %v920 = vadd.f32 %v853, %v919
    %v921 = vpop.f32.mrb[0].mxu0
    %922 = vmatprep.mubr.bf16.mxu0 0
    %923 = vmatmul.mubr.bf16.gmra.mrb[0].mxu0 %v880
    %v924 = vpop.f32.mrb[0].mxu0
    %v925 = vadd.f32 %v858, %v924
    %v926 = vpop.f32.mrb[0].mxu0
    %v927 = vpop.f32.mrb[0].mxu0
    %v928 = vadd.f32 %v863, %v927
    %v929 = vpop.f32.mrb[0].mxu0
    %930 = vdwg.mxu0
    %v931 = vmul.f32 %v917, 0.5
    %v932 = vmul.f32 %v920, 0.5
    %v933 = vmul.f32 %v925, 0.5
    %v934 = vmul.f32 %v928, 0.5
    %v935 = vtanh.pop %v931
    %v936 = vtanh.pop %v932
    %v937 = vtanh.pop %v933
    %v938 = vtanh.pop %v934
    %v939 = vmul.f32 %v935, 0.5
    %v940 = vmul.f32 %v936, 0.5
    %v941 = vmul.f32 %v937, 0.5
    %v942 = vmul.f32 %v938, 0.5
    %v943 = vadd.f32 %v939, 0.5
    %v944 = vadd.f32 %v940, 0.5
    %v945 = vadd.f32 %v941, 0.5
    %v946 = vadd.f32 %v942, 0.5
    %v947 = vpack.c.bf16 %v944, %v943
    %v948 = vpack.c.bf16 %v946, %v945
    %949 = vmatprep.subr.bf16.mxu0 0
    %950 = vmatpush1.bf16.msra.mxu0 %v833
    %951 = vmatprep.subr.bf16.mxu0 0
    %952 = vmatpush1.bf16.msra.mxu0 %v834
    %953 = vmatprep.subr.bf16.mxu0 0
    %954 = vmatpush1.bf16.msra.mxu0 %v835
    %955 = vmatprep.subr.bf16.mxu0 0
    %956 = vmatpush1.bf16.msra.mxu0 %v836
    %957 = vmatprep.subr.bf16.mxu0 0
    %958 = vmatpush1.bf16.msra.mxu0 0
    %959 = vmatprep.subr.bf16.mxu0 0
    %960 = vmatpush1.bf16.msra.mxu0 0
    %961 = vmatprep.subr.bf16.mxu0 0
    %962 = vmatpush1.bf16.msra.mxu0 0
    %963 = vmatprep.subr.bf16.mxu0 0
    %964 = vmatpush1.bf16.msra.mxu0 0
    %965 = vmatprep.subr.bf16.mxu0 0
    %966 = vmatpush1.bf16.msra.mxu0 0
    %967 = vmatprep.subr.bf16.mxu0 0
    %968 = vmatpush1.bf16.msra.mxu0 0
    %969 = vmatprep.subr.bf16.mxu0 0
    %970 = vmatpush1.bf16.msra.mxu0 0
    %971 = vmatprep.subr.bf16.mxu0 0
    %972 = vmatpush1.bf16.msra.mxu0 0
    %973 = vmatprep.subr.bf16.mxu0 0
    %974 = vmatpush1.bf16.msra.mxu0 0
    %975 = vmatprep.subr.bf16.mxu0 0
    %976 = vmatpush1.bf16.msra.mxu0 0
    %977 = vmatprep.subr.bf16.mxu0 0
    %978 = vmatpush1.bf16.msra.mxu0 0
    %979 = vmatprep.subr.bf16.mxu0 0
    %980 = vmatpush1.bf16.msra.mxu0 0
    %981 = vmatprep.mubr.bf16.mxu0 0
    %982 = vmatmul.mubr.bf16.gmra.mrb[0].mxu0 %v877
    %v983 = vpop.f32.mrb[0].mxu0
    %v984 = vadd.f32 %v848, %v983
    %v985 = vpop.f32.mrb[0].mxu0
    %v986 = vpop.f32.mrb[0].mxu0
    %v987 = vadd.f32 %v853, %v986
    %v988 = vpop.f32.mrb[0].mxu0
    %989 = vmatprep.mubr.bf16.mxu0 0
    %990 = vmatmul.mubr.bf16.gmra.mrb[0].mxu0 %v880
    %v991 = vpop.f32.mrb[0].mxu0
    %v992 = vadd.f32 %v858, %v991
    %v993 = vpop.f32.mrb[0].mxu0
    %v994 = vpop.f32.mrb[0].mxu0
    %v995 = vadd.f32 %v863, %v994
    %v996 = vpop.f32.mrb[0].mxu0
    %997 = vdwg.mxu0
    %v998 = vmul.f32 %v984, 0.5
    %v999 = vmul.f32 %v987, 0.5
    %v1000 = vmul.f32 %v992, 0.5
    %v1001 = vmul.f32 %v995, 0.5
    %v1002 = vtanh.pop %v998
    %v1003 = vtanh.pop %v999
    %v1004 = vtanh.pop %v1000
    %v1005 = vtanh.pop %v1001
    %v1006 = vmul.f32 %v1002, 0.5
    %v1007 = vmul.f32 %v1003, 0.5
    %v1008 = vmul.f32 %v1004, 0.5
    %v1009 = vmul.f32 %v1005, 0.5
    %v1010 = vadd.f32 %v1006, 0.5
    %v1011 = vadd.f32 %v1007, 0.5
    %v1012 = vadd.f32 %v1008, 0.5
    %v1013 = vadd.f32 %v1009, 0.5
    %v1014 = vpack.c.bf16 %v1011, %v1010
    %v1015 = vpack.c.bf16 %v1013, %v1012
    %v1016 = vmax.bf16 %v947, %v1014
    %v1017 = vmax.bf16 %v948, %v1015
    %v1018 = vld [vmem:[%s7] sm:$0x1]
    %v1019 = vld [vmem:[%s8] sm:$0x3]
    %1021 = vset.pattern.permute.xlu0 0
    %1022 = vperm.xlu0 %1021, %v1019
    %v1023 = vpop.permute.xlu0 %1022
    %vm1025 = vcmask 261120
    %v1027 = vsel %vm1025, %v1018, 0
    %1029 = vmatprep.subr.bf16.mxu0 0
    %1030 = vmatpush1.bf16.msra.mxu0 %v1016
    %1031 = vmatprep.subr.bf16.mxu0 0
    %1032 = vmatpush1.bf16.msra.mxu0 %v1017
    %1033 = vmatprep.subr.bf16.mxu0 0
    %1034 = vmatpush1.bf16.msra.mxu0 0
    %1035 = vmatprep.subr.bf16.mxu0 0
    %1036 = vmatpush1.bf16.msra.mxu0 0
    %1037 = vmatprep.subr.bf16.mxu0 0
    %1038 = vmatpush1.bf16.msra.mxu0 0
    %1039 = vmatprep.subr.bf16.mxu0 0
    %1040 = vmatpush1.bf16.msra.mxu0 0
    %1041 = vmatprep.subr.bf16.mxu0 0
    %1042 = vmatpush1.bf16.msra.mxu0 0
    %1043 = vmatprep.subr.bf16.mxu0 0
    %1044 = vmatpush1.bf16.msra.mxu0 0
    %1045 = vmatprep.subr.bf16.mxu0 0
    %1046 = vmatpush1.bf16.msra.mxu0 0
    %1047 = vmatprep.subr.bf16.mxu0 0
    %1048 = vmatpush1.bf16.msra.mxu0 0
    %1049 = vmatprep.subr.bf16.mxu0 0
    %1050 = vmatpush1.bf16.msra.mxu0 0
    %1051 = vmatprep.subr.bf16.mxu0 0
    %1052 = vmatpush1.bf16.msra.mxu0 0
    %1053 = vmatprep.subr.bf16.mxu0 0
    %1054 = vmatpush1.bf16.msra.mxu0 0
    %1055 = vmatprep.subr.bf16.mxu0 0
    %1056 = vmatpush1.bf16.msra.mxu0 0
    %1057 = vmatprep.subr.bf16.mxu0 0
    %1058 = vmatpush1.bf16.msra.mxu0 0
    %1059 = vmatprep.subr.bf16.mxu0 0
    %1060 = vmatpush1.bf16.msra.mxu0 0
    %1061 = vmatprep.mubr.bf16.mxu0 0
    %1062 = vmatmul.mubr.bf16.gmra.mrb[0].mxu0 %v1027
    %v1063 = vpop.f32.mrb[0].mxu0
    %v1064 = vadd.f32 %v1023, %v1063
    %v1065 = vpop.f32.mrb[0].mxu0
    %v1066 = vpop.f32.mrb[0].mxu0
    %v1067 = vpop.f32.mrb[0].mxu0
    %1068 = vdwg.mxu0
    %v1070 = vrot.slane %v1064, 1
    %v1073 = vadd.f32 %v34, %v1064
    %v1074 = vadd.f32 %v36, %v1070
    %v1077 = vrot.slane %v1074, 7
    %vm1078 = vcmask 1041409
    %v1079 = vsel %vm1078, %v1077, %v1073
    %vm1081 = vcmask 58368
    %1082 = vst.msk [vmem:[#allocation2] sm:$0x3] %vm1081, %v1079
    // Predicated region
    $region38: #{tpu_custom_call.1} parent=1 // pred_check
      _
    $region39: #{tpu_custom_call.1} parent=1 // pred_check_branch
      %1084 = sbr.rel (0) target = $region41
    $region40: #{tpu_custom_call.1} parent=1 // pred_region
      %s1086 = ssub.s32 32, 32
      %1087 = vsyncadd [#allocation3], %s1086
      %s1089 = sshll.u32 [#allocation2], 4
      %s1090 = int_to_ptr.vmem [resolvable:$true] %s1089
      %1092 = dma.vmem_to_hbm [thread:$0]  %s1090, 32, %s9, [#allocation3]
    $region41: #{tpu_custom_call.1} parent=1 // pred_fallthru
      _
    // Predicated region
    $region42: #{tpu_custom_call.1} parent=1 // pred_check
      _
    $region43: #{tpu_custom_call.1} parent=1 // pred_check_branch
      %1094 = sbr.rel (0) target = $region45
    $region44: #{tpu_custom_call.1} parent=1 // pred_region
      %1095 = dma.done [#allocation3], 32
    $region45: #{tpu_custom_call.1} parent=1 // pred_fallthru
      _
    %1096 = vsyncpa [#allocation3], 1

</llo_original>
